<compile_context>
chip_gen: v5e
topology: v5e:2x2
jax: 0.10.0
libtpu: 0.0.40
codegen_flags: <defaults>
</compile_context>

<pallas_src>
import jax
import jax.numpy as jnp
from jax import lax
from jax.experimental import pallas as pl
from jax.experimental.pallas import tpu as pltpu


def _pick_tile(n, target):
    """Largest multiple-of-8 divisor of n that is <= target (or n itself)."""
    if n <= target:
        return n
    t = (target // 8) * 8
    while t >= 8:
        if n % t == 0:
            return t
        t -= 8
    return n


# -----------------------------------------------------------------------------
# Kernel 1: feature extraction (non-overlapping ds x ds conv as a matmul)
# -----------------------------------------------------------------------------
def _make_feat_kernel(feat_scale):
    def _feat_kernel(x_ref, w_ref, b_ref, out_ref):
        # x_ref: (1, tl, P)  w_ref: (P, Cf)  b_ref: (1, Cf)  out_ref: (1, tl, Cf)
        x = x_ref[0]
        y = jnp.dot(x, w_ref[...], preferred_element_type=jnp.float32)
        y = jnp.maximum(y + b_ref[...], 0.0) * feat_scale   # ReLU, fold corr scale
        out_ref[0] = y.astype(out_ref.dtype)
    return _feat_kernel


def extract_features(imgs_nchw, w, b, ds, feat_scale, target_tl=512):
    """Patch-embed 'backbone': Conv2d(Cin, Cf, kernel=ds, stride=ds) + ReLU.

    Both images are processed in a single pallas_call (stacked along batch).
    """
    # TODO(synk): the full GMFlow CNN backbone + transformer is replaced by a
    # single deterministic patch-embed conv; the global matching head below is
    # the faithful part.
    N, Cin, H, W = imgs_nchw.shape
    Hs, Ws = H // ds, W // ds
    L, P = Hs * Ws, Cin * ds * ds
    Cf = w.shape[1]

    # im2col for non-overlapping patches (pure layout plumbing)
    x = imgs_nchw.reshape(N, Cin, Hs, ds, Ws, ds)
    x = jnp.transpose(x, (0, 2, 4, 1, 3, 5)).reshape(N, L, P)

    tl = _pick_tile(L, target_tl)
    return pl.pallas_call(
        _make_feat_kernel(feat_scale),
        out_shape=jax.ShapeDtypeStruct((N, L, Cf), jnp.bfloat16),
        grid_spec=pltpu.PrefetchScalarGridSpec(
            num_scalar_prefetch=0,
            grid=(N, L // tl),
            in_specs=[
                pl.BlockSpec((1, tl, P), lambda n, li: (n, li, 0)),
                pl.BlockSpec((P, Cf), lambda n, li: (0, 0)),
                pl.BlockSpec((1, Cf), lambda n, li: (0, 0)),
            ],
            out_specs=pl.BlockSpec((1, tl, Cf), lambda n, li: (n, li, 0)),
        ),
        compiler_params=pltpu.CompilerParams(
            dimension_semantics=("parallel", "parallel")),
    )(x, w, b)


# -----------------------------------------------------------------------------
# Kernel 2: global correlation softmax matching (flash-style online softmax)
# -----------------------------------------------------------------------------
def _corr_flow_kernel(f0_ref, f1_ref, coords_ref, out_ref, m_sc, l_sc, acc_sc):
    # f0_ref: (1, tq, C) bf16   f1_ref: (1, tk, C) bf16
    # coords_ref: (tk, 128) f32 (lanes 0/1 = x/y, rest zero)
    # out_ref: (1, tq, 128) f32 (lanes 0/1 = E[x]/E[y])
    ki = pl.program_id(2)

    @pl.when(ki == 0)
    def _():
        m_sc[...] = jnp.full(m_sc.shape, -jnp.inf, dtype=m_sc.dtype)
        l_sc[...] = jnp.zeros(l_sc.shape, dtype=l_sc.dtype)
        acc_sc[...] = jnp.zeros(acc_sc.shape, dtype=acc_sc.dtype)

    # correlation tile [tq, tk]; contract last dims of both operands (no .T),
    # bf16 inputs, f32 accumulation. 1/sqrt(C) is already folded into features.
    corr = lax.dot_general(
        f0_ref[0], f1_ref[0],
        dimension_numbers=(((1,), (1,)), ((), ())),
        preferred_element_type=jnp.float32)

    m_prev = m_sc[...]                                            # [tq, 1]
    m_new = jnp.maximum(m_prev, jnp.max(corr, axis=-1, keepdims=True))
    alpha = jnp.exp(m_prev - m_new)                               # [tq, 1]
    p = jnp.exp(corr - m_new)                                     # [tq, tk]
    l_sc[...] = alpha * l_sc[...] + jnp.sum(p, axis=-1, keepdims=True)
    acc_sc[...] = alpha * acc_sc[...] + jnp.dot(
        p, coords_ref[...], preferred_element_type=jnp.float32)   # [tq, 128]
    m_sc[...] = m_new

    @pl.when(ki == pl.num_programs(2) - 1)
    def _():
        inv_l = pl.reciprocal(l_sc[...], approx=True)             # EUP, [tq,1]
        out_ref[0] = acc_sc[...] * inv_l                          # E[coords]


def global_correlation_softmax_flow(f0, f1, Hs, Ws, target_tq=128, target_tk=128):
    """f0, f1: [B, L, C] bf16 (pre-scaled by C^-1/4) -> flow_lr [B, L, 2] f32."""
    B, L, Cf = f0.shape
    tq = _pick_tile(L, target_tq)
    tk = _pick_tile(L, target_tk)

    ys, xs = jnp.meshgrid(
        jnp.arange(Hs, dtype=jnp.float32),
        jnp.arange(Ws, dtype=jnp.float32),
        indexing="ij",
    )
    # (x, y) ordering, matching GMFlow's coords_grid convention
    coords = jnp.stack([xs.reshape(-1), ys.reshape(-1)], axis=-1)   # [L, 2]
    # lane-dense padded coords slab: [L, 128], lanes >= 2 are zero
    coords_pad = jnp.zeros((L, 128), jnp.float32).at[:, :2].set(coords)

    match_pad = pl.pallas_call(
        _corr_flow_kernel,
        out_shape=jax.ShapeDtypeStruct((B, L, 128), jnp.float32),
        grid_spec=pltpu.PrefetchScalarGridSpec(
            num_scalar_prefetch=0,
            grid=(B, L // tq, L // tk),
            in_specs=[
                pl.BlockSpec((1, tq, Cf), lambda b, qi, ki: (b, qi, 0)),
                pl.BlockSpec((1, tk, Cf), lambda b, qi, ki: (b, ki, 0)),
                pl.BlockSpec((tk, 128), lambda b, qi, ki: (ki, 0)),
            ],
            out_specs=pl.BlockSpec((1, tq, 128), lambda b, qi, ki: (b, qi, 0)),
            scratch_shapes=[
                pltpu.VMEM((tq, 1), jnp.float32),    # running max
                pltpu.VMEM((tq, 1), jnp.float32),    # running denom
                pltpu.VMEM((tq, 128), jnp.float32),  # running numerator
            ],
        ),
        compiler_params=pltpu.CompilerParams(
            dimension_semantics=("parallel", "parallel", "arbitrary")),
    )(f0, f1, coords_pad)

    match = match_pad[..., :2]               # [B, L, 2] = E[coords_tgt]
    return match - coords[None]              # flow = E[coords_tgt] - coords_src


# -----------------------------------------------------------------------------
# Full forward: im1, im2 (NCHW, [0,1]) -> flow (NCHW, 2 channels, full res)
# -----------------------------------------------------------------------------
def me_gmflow_forward(img1, img2, w, b, ds):
    B, Cin, H, W = img1.shape
    Hs, Ws = H // ds, W // ds
    Cf = w.shape[1]
    # fold corr's 1/sqrt(C) scale into both features: (C^-1/4 f0)(C^-1/4 f1)^T
    feat_scale = float(Cf) ** -0.25

    imgs = jnp.concatenate([img1, img2], axis=0)            # one feature call
    feats = extract_features(imgs, w, b, ds, feat_scale)    # [2B, L, Cf] bf16
    f0, f1 = feats[:B], feats[B:]

    flow_lr = global_correlation_softmax_flow(f0, f1, Hs, Ws)   # [B, L, 2]

    flow_lr = flow_lr.reshape(B, Hs, Ws, 2).transpose(0, 3, 1, 2)  # [B,2,Hs,Ws]
    # TODO(synk): GMFlow uses bilinear (or learned convex) upsampling; nearest
    # upsample is used here as glue.
    flow = jnp.repeat(jnp.repeat(flow_lr, ds, axis=2), ds, axis=3) * float(ds)
    return flow                                             # [B, 2, H, W]


# -----------------------------------------------------------------------------
# Pure-JAX reference (same bf16 feature quantization) for a sanity check
# -----------------------------------------------------------------------------
def _reference_flow(img1, img2, w, b, ds):
    B, Cin, H, W = img1.shape
    Hs, Ws = H // ds, W // ds
    Cf = w.shape[1]
    feat_scale = float(Cf) ** -0.25

    def feats(img):
        x = img.reshape(B, Cin, Hs, ds, Ws, ds)
        x = jnp.transpose(x, (0, 2, 4, 1, 3, 5)).reshape(B, Hs * Ws, -1)
        y = jnp.maximum(x @ w + b, 0.0) * feat_scale
        return y.astype(jnp.bfloat16).astype(jnp.float32)

    f0, f1 = feats(img1), feats(img2)
    corr = jnp.einsum("blc,bmc->blm", f0, f1)
    prob = jax.nn.softmax(corr, axis=-1)
    ys, xs = jnp.meshgrid(jnp.arange(Hs, dtype=jnp.float32),
                          jnp.arange(Ws, dtype=jnp.float32), indexing="ij")
    coords = jnp.stack([xs.reshape(-1), ys.reshape(-1)], axis=-1)
    match = jnp.einsum("blm,mc->blc", prob, coords)
    flow_lr = (match - coords[None]).reshape(B, Hs, Ws, 2).transpose(0, 3, 1, 2)
    return jnp.repeat(jnp.repeat(flow_lr, ds, axis=2), ds, axis=3) * float(ds)


if __name__ == "__main__":
    key = jax.random.PRNGKey(0)
    k_im1, k_im2, k_w, k_b = jax.random.split(key, 4)

    # small shapes consistent with the module: two RGB images, NCHW
    B, Cin, H, W = 2, 3, 64, 64
    ds = 4            # feature downsample factor (GMFlow uses 8; kept small)
    Cf = 128          # feature dimension (GMFlow uses 128)

    img1 = jax.random.uniform(k_im1, (B, Cin, H, W), dtype=jnp.float32)
    img2 = jax.random.uniform(k_im2, (B, Cin, H, W), dtype=jnp.float32)

    # deterministic synthetic parameters (patch-embed conv weight + bias)
    P = Cin * ds * ds
    w = jax.random.normal(k_w, (P, Cf), dtype=jnp.float32) * 0.05
    b = jax.random.normal(k_b, (1, Cf), dtype=jnp.float32) * 0.01

    flow = me_gmflow_forward(img1, img2, w, b, ds)
    jax.block_until_ready(flow)
    assert flow.shape == (B, 2, H, W)

    ref = _reference_flow(img1, img2, w, b, ds)
    max_err = float(jnp.max(jnp.abs(flow - ref)))
    assert bool(jnp.all(jnp.isfinite(flow)))
    assert max_err < 0.5, f"max abs err vs reference: {max_err}"
    print("KERNEL_OK")
</pallas_src>

<mosaic_0001>
module attributes {stable_mosaic.version = 11 : i64} {
  func.func @_feat_kernel(%arg0: i32, %arg1: i32, %arg2: memref<1x256x48xf32, #tpu.memory_space<vmem>>, %arg3: memref<48x128xf32, #tpu.memory_space<vmem>>, %arg4: memref<1x128xf32, #tpu.memory_space<vmem>>, %arg5: memref<1x256x128xbf16, #tpu.memory_space<vmem>>) attributes {dimension_semantics = [#tpu.dimension_semantics<parallel>, #tpu.dimension_semantics<parallel>], iteration_bounds = array<i64: 4, 1>, scalar_prefetch = 0 : i64, scratch_operands = 0 : i64, tpu.core_type = #tpu.core_type<tc>, window_params = [{transform_indices = @transform_0, window_bounds = array<i64: 1, 256, 48>}, {pipeline_mode = #tpu.pipeline_mode<synchronous>, transform_indices = @transform_1, window_bounds = array<i64: 48, 128>}, {pipeline_mode = #tpu.pipeline_mode<synchronous>, transform_indices = @transform_2, window_bounds = array<i64: 1, 128>}, {transform_indices = @transform_3, window_bounds = array<i64: 1, 256, 128>}]} {
    %c0 = arith.constant 0 : index
    %c0_0 = arith.constant 0 : index
    %c0_1 = arith.constant 0 : index
    %0 = vector.load %arg2[%c0, %c0_0, %c0_1] : memref<1x256x48xf32, #tpu.memory_space<vmem>>, vector<1x256x48xf32>
    %1 = vector.shape_cast %0 : vector<1x256x48xf32> to vector<256x48xf32>
    %c0_2 = arith.constant 0 : index
    %c0_3 = arith.constant 0 : index
    %2 = vector.load %arg3[%c0_2, %c0_3] : memref<48x128xf32, #tpu.memory_space<vmem>>, vector<48x128xf32>
    %cst = arith.constant dense<0.000000e+00> : vector<256x128xf32>
    %3 = tpu.matmul %1, %2, %cst {dimension_numbers = #tpu.dot_dimension_numbers<[1], [0], [0], [1], [0, 0, 1, 1], [], []>} : vector<256x48xf32>, vector<48x128xf32>, vector<256x128xf32> -> vector<256x128xf32>
    %c0_4 = arith.constant 0 : index
    %c0_5 = arith.constant 0 : index
    %4 = vector.load %arg4[%c0_4, %c0_5] : memref<1x128xf32, #tpu.memory_space<vmem>>, vector<1x128xf32>
    %5 = vector.broadcast %4 : vector<1x128xf32> to vector<256x128xf32>
    %6 = arith.addf %3, %5 : vector<256x128xf32>
    %cst_6 = arith.constant 0.000000e+00 : f32
    %7 = vector.broadcast %cst_6 : f32 to vector<256x128xf32>
    %8 = arith.maximumf %6, %7 : vector<256x128xf32>
    %cst_7 = arith.constant 0.297301769 : f32
    %9 = vector.broadcast %cst_7 : f32 to vector<256x128xf32>
    %10 = arith.mulf %8, %9 : vector<256x128xf32>
    %11 = arith.truncf %10 : vector<256x128xf32> to vector<256x128xbf16>
    %c0_8 = arith.constant 0 : index
    %c0_9 = arith.constant 0 : index
    %c0_10 = arith.constant 0 : index
    %12 = vector.load %arg5[%c0_8, %c0_9, %c0_10] : memref<1x256x128xbf16, #tpu.memory_space<vmem>>, vector<1x256x128xbf16>
    %13 = vector.shape_cast %12 : vector<1x256x128xbf16> to vector<256x128xbf16>
    %14 = vector.shape_cast %11 : vector<256x128xbf16> to vector<1x256x128xbf16>
    tpu.vector_store %arg5[%c0_8, %c0_9, %c0_10], %14 {strides = array<i32>} : memref<1x256x128xbf16, #tpu.memory_space<vmem>>, vector<1x256x128xbf16>,
    return
  }
  func.func @transform_0(%arg0: i32, %arg1: i32) -> (i32, i32, i32) {
    %c0_i32 = arith.constant 0 : i32
    %c0_i32_0 = arith.constant 0 : i32
    return %arg0, %arg1, %c0_i32 : i32, i32, i32
  }
  func.func @transform_1(%arg0: i32, %arg1: i32) -> (i32, i32) {
    %c0_i32 = arith.constant 0 : i32
    %c0_i32_0 = arith.constant 0 : i32
    %c0_i32_1 = arith.constant 0 : i32
    return %c0_i32, %c0_i32_0 : i32, i32
  }
  func.func @transform_2(%arg0: i32, %arg1: i32) -> (i32, i32) {
    %c0_i32 = arith.constant 0 : i32
    %c0_i32_0 = arith.constant 0 : i32
    %c0_i32_1 = arith.constant 0 : i32
    return %c0_i32, %c0_i32_0 : i32, i32
  }
  func.func @transform_3(%arg0: i32, %arg1: i32) -> (i32, i32, i32) {
    %c0_i32 = arith.constant 0 : i32
    %c0_i32_0 = arith.constant 0 : i32
    return %arg0, %arg1, %c0_i32 : i32, i32, i32
  }
}

</mosaic_0001>

<llo_original>
// kernel: tpu_custom_call.1
$region0: #{tpu_custom_call.1}
  #allocation0 [shape = 'u32[]', space=smem, size = 0x4, offset = 0x4, fixed_abs, tag = 'smem constant byte address 0x4 - core index']
  #allocation1 [shape = 'u32[72,128]{1,0:T(1,128)}', space=vmem, size = 0x9000, scoped, tag = 'internal scratch']
  %s0 = inlined_call_operand.vmem [shape: f32[4,256,48], index: 0, kind: input, shape index: {}]
  %s1 = inlined_call_operand.vmem [shape: f32[48,128], index: 1, kind: input, shape index: {}]
  %s2 = inlined_call_operand.vmem [shape: f32[1,128], index: 2, kind: input, shape index: {}]
  %s3 = inlined_call_operand.hbm [shape: bf16[4,256,128], index: 3, kind: output, shape index: {}]
  %s4 = sld [smem:[#allocation0]]
  $region45: #{tpu_custom_call.1} parent=0
    _
  %s6 = ssub.s32 1, %s4
  %s7 = scalar_select 0, %s6, %s4
  $region1: #{tpu_custom_call.1} parent=0
    #allocation2 [shape = 'u8[131072]{0}', space=vmem, size = 0x20000, scoped, tag = 'output window, operand 0']
    #allocation3 [shape = 's32[2]{0}', space=sflag, size = 0x8, scoped, tag = 'scoped memory for tpu_custom_call.1']
    %8 = vsyncpa [#allocation3], 0
    %s9 = scalar_lea.sflag [#allocation3], 1
    %10 = vsyncpa %s9, 0
    loop: start=0, step=1, limit=6
    $region2: #{tpu_custom_call.1} parent=1 // loop_pre_header
      _
    $region3: #{tpu_custom_call.1} parent=1 // loop_header
      %s12 = sphi 0, %s16
      %p13 = scmp.ge.s32.totalorder %s12, 6
      %s19 = sphi 0, %s31
      %s20 = sphi 0, %s27
      %s21 = sphi 0, %s19
      %s22 = sphi 0, %s20
      %s23 = sphi 0, %s21
      %s24 = sphi 0, %s22
      %s36 = sphi 0, %s38
      %s39 = sphi 0, %s36
      %s40 = sphi 0, %s39
      %s56 = sphi 0, %s40
      %s60 = sphi 0, %s60
      %s62 = sphi 0, %s60
      %s63 = sphi 0, %s62
      %s77 = sphi 0, %s63
      %s81 = sphi 0, %s81
      %s83 = sphi 0, %s81
      %s84 = sphi 0, %s83
      %s98 = sphi 0, %s84
      %s106 = sphi 0, %s108
      %s109 = sphi 0, %s106
      %s110 = sphi 0, %s109
      %s126 = sphi 0, %s110
    $region4: #{tpu_custom_call.1} parent=1 // loop_header_branch
      %15 = sbr.rel (%p13) target = $region8
    $region5: #{tpu_custom_call.1} parent=1 // loop_body
      %s17 = ssub.s32 %s12, 1
      %s18 = ssub.s32 %s12, 2
      %s25 = sadd.s32 1, %s20
      %p26 = scmp.ge.s32.totalorder %s25, 1
      %s27 = scalar_select %p26, 0, %s25
      %s28 = sadd.s32 1, %s19
      %s29 = scalar_select %p26, %s28, %s19
      %p30 = scmp.ge.s32.totalorder %s29, 4
      %s31 = scalar_select %p30, 0, %s29
      %s32 = ssub.s32 %s19, %s31
      %s33 = ssub.s32 %s20, %s27
      %s34 = sor.u32 %s32, %s33
      %p35 = scmp.eq.s32.totalorder %s34, 0
      %s37 = sadd.s32 %s36, 1
      %s38 = scalar_select %p35, %s36, %s37
      %p41 = pneg %p35
      %p42 = scmp.eq.s32.totalorder %s12, 3
      %p43 = por %p41, %p42
      %p44 = scmp.ne.s32.totalorder %s36, %s39
      %p45 = scmp.eq.s32.totalorder %s12, 0
      %p46 = por %p44, %p45
      %p47 = scmp.ne.s32.totalorder %s36, %s39
      %p48 = scmp.eq.s32.totalorder %s17, 3
      %p49 = por %p47, %p48
      %p50 = scmp.ne.s32.totalorder %s39, %s40
      %p51 = scmp.eq.s32.totalorder %s17, 0
      %p52 = por %p50, %p51
      %p53 = scmp.ne.s32.totalorder %s39, %s40
      %p54 = scmp.eq.s32.totalorder %s18, 3
      %p55 = por %p53, %p54
      %p57 = scmp.ne.s32.totalorder %s40, %s56
      %p58 = scmp.eq.s32.totalorder %s18, 0
      %p59 = por %p57, %p58
      %s61 = sadd.s32 %s60, 1
      %p64 = scmp.eq.s32.totalorder %s12, 3
      %p65 = scmp.ne.s32.totalorder %s60, %s62
      %p66 = scmp.eq.s32.totalorder %s12, 0
      %p67 = por %p65, %p66
      %p68 = scmp.ne.s32.totalorder %s60, %s62
      %p69 = scmp.eq.s32.totalorder %s17, 3
      %p70 = por %p68, %p69
      %p71 = scmp.ne.s32.totalorder %s62, %s63
      %p72 = scmp.eq.s32.totalorder %s17, 0
      %p73 = por %p71, %p72
      %p74 = scmp.ne.s32.totalorder %s62, %s63
      %p75 = scmp.eq.s32.totalorder %s18, 3
      %p76 = por %p74, %p75
      %p78 = scmp.ne.s32.totalorder %s63, %s77
      %p79 = scmp.eq.s32.totalorder %s18, 0
      %p80 = por %p78, %p79
      %s82 = sadd.s32 %s81, 1
      %p85 = scmp.eq.s32.totalorder %s12, 3
      %p86 = scmp.ne.s32.totalorder %s81, %s83
      %p87 = scmp.eq.s32.totalorder %s12, 0
      %p88 = por %p86, %p87
      %p89 = scmp.ne.s32.totalorder %s81, %s83
      %p90 = scmp.eq.s32.totalorder %s17, 3
      %p91 = por %p89, %p90
      %p92 = scmp.ne.s32.totalorder %s83, %s84
      %p93 = scmp.eq.s32.totalorder %s17, 0
      %p94 = por %p92, %p93
      %p95 = scmp.ne.s32.totalorder %s83, %s84
      %p96 = scmp.eq.s32.totalorder %s18, 3
      %p97 = por %p95, %p96
      %p99 = scmp.ne.s32.totalorder %s84, %s98
      %p100 = scmp.eq.s32.totalorder %s18, 0
      %p101 = por %p99, %p100
      %s102 = ssub.s32 %s19, %s31
      %s103 = ssub.s32 %s20, %s27
      %s104 = sor.u32 %s102, %s103
      %p105 = scmp.eq.s32.totalorder %s104, 0
      %s107 = sadd.s32 %s106, 1
      %s108 = scalar_select %p105, %s106, %s107
      %p111 = pneg %p105
      %p112 = scmp.eq.s32.totalorder %s12, 3
      %p113 = por %p111, %p112
      %p114 = scmp.ne.s32.totalorder %s106, %s109
      %p115 = scmp.eq.s32.totalorder %s12, 0
      %p116 = por %p114, %p115
      %p117 = scmp.ne.s32.totalorder %s106, %s109
      %p118 = scmp.eq.s32.totalorder %s17, 3
      %p119 = por %p117, %p118
      %p120 = scmp.ne.s32.totalorder %s109, %s110
      %p121 = scmp.eq.s32.totalorder %s17, 0
      %p122 = por %p120, %p121
      %p123 = scmp.ne.s32.totalorder %s109, %s110
      %p124 = scmp.eq.s32.totalorder %s18, 3
      %p125 = por %p123, %p124
      %p127 = scmp.ne.s32.totalorder %s110, %s126
      %p128 = scmp.eq.s32.totalorder %s18, 0
      %p129 = por %p127, %p128
      %p130 = scmp.le.s32.totalorder 1, %s12
      %p131 = scmp.lt.s32.totalorder %s12, 5
      %p132 = pnand %p130, %p131
      %p133 = pneg %p132
      // Predicated region
      $region9: #{tpu_custom_call.1} parent=5 // pred_check
        _
      $region10: #{tpu_custom_call.1} parent=5 // pred_check_branch
        %135 = sbr.rel (%p132) target = $region12
      $region11: #{tpu_custom_call.1} parent=5 // pred_region
        %s136 = ssub.s32 %s12, 1
        // Predicated region
        $region13: #{tpu_custom_call.1} parent=11 // pred_check
          %p137 = pneg %p73
        $region14: #{tpu_custom_call.1} parent=11 // pred_check_branch
          %139 = sbr.rel (%p137) target = $region16
        $region15: #{tpu_custom_call.1} parent=11 // pred_region
          _
        $region16: #{tpu_custom_call.1} parent=11 // pred_fallthru
          _
        // Predicated region
        $region17: #{tpu_custom_call.1} parent=11 // pred_check
          %p140 = pneg %p94
        $region18: #{tpu_custom_call.1} parent=11 // pred_check_branch
          %142 = sbr.rel (%p140) target = $region20
        $region19: #{tpu_custom_call.1} parent=11 // pred_region
          _
        $region20: #{tpu_custom_call.1} parent=11 // pred_fallthru
          _
      $region12: #{tpu_custom_call.1} parent=5 // pred_fallthru
        _
      %p143 = scmp.lt.s32.totalorder %s12, 4
      // Predicated region
      $region21: #{tpu_custom_call.1} parent=5 // pred_check
        %p144 = pneg %p143
      $region22: #{tpu_custom_call.1} parent=5 // pred_check_branch
        %146 = sbr.rel (%p144) target = $region24
      $region23: #{tpu_custom_call.1} parent=5 // pred_region
        // Predicated region
        $region25: #{tpu_custom_call.1} parent=23 // pred_check
          %p147 = pneg %p46
        $region26: #{tpu_custom_call.1} parent=23 // pred_check_branch
          %149 = sbr.rel (%p147) target = $region28
        $region27: #{tpu_custom_call.1} parent=23 // pred_region
          %s150 = smul.u32 32, %s20
          %p151 = scmp.lt.s32.totalorder %s19, 3
          %s152 = scalar_select %p151, %s19, 3
          %p153 = scmp.lt.s32.totalorder %s150, 31
          %s154 = scalar_select %p153, %s150, 31
          %s155 = smul.addr %s152, 32
          %s156 = sadd.s32 %s154, %s155
          %s157 = smul.addr %s156, 8
          %s158 = scalar_lea.vmem %s0, %s157
          %s159 = smul.u32 32, %s20
        $region28: #{tpu_custom_call.1} parent=23 // pred_fallthru
          _
      $region24: #{tpu_custom_call.1} parent=5 // pred_fallthru
        _
      %p160 = scmp.le.s32.totalorder 1, %s12
      %p161 = scmp.lt.s32.totalorder %s12, 5
      %p162 = pnand %p160, %p161
      %p163 = pneg %p162
      // Predicated region
      $region29: #{tpu_custom_call.1} parent=5 // pred_check
        _
      $region30: #{tpu_custom_call.1} parent=5 // pred_check_branch
        %165 = sbr.rel (%p162) target = $region32
      $region31: #{tpu_custom_call.1} parent=5 // pred_region
        %s166 = ssub.s32 %s12, 1
        %s167 = smul.u32 32, %s22
        %p168 = scmp.lt.s32.totalorder %s21, 3
        %s169 = scalar_select %p168, %s21, 3
        %p170 = scmp.lt.s32.totalorder %s167, 31
        %s171 = scalar_select %p170, %s167, 31
        %s172 = smul.addr %s169, 32
        %s173 = sadd.s32 %s171, %s172
        %s174 = smul.addr %s173, 8
        %s175 = scalar_lea.vmem %s0, %s174
        %p176 = pneg %p52
        %p177 = pneg %p49
        %p178 = pneg %p73
        %p179 = pneg %p70
        %p180 = pneg %p94
        %p181 = pneg %p91
        %p182 = pneg %p122
        %p183 = pneg %p119
        %s184 = sand.u32 %s109, 1
        %s185 = scalar_lea.sflag [#allocation3], %s184
        %s186 = sand.u32 %s109, 1
        %s187 = smul.addr %s186, 128
        %s188 = scalar_lea.vmem [#allocation2], %s187
        %s189 = smul.u32 32, %s22
        %p190 = scmp.lt.s32.totalorder %s21, 3
        %s191 = scalar_select %p190, %s21, 3
        %p192 = scmp.lt.s32.totalorder %s189, 31
        %s193 = scalar_select %p192, %s189, 31
        %s194 = smul.addr %s191, 32
        %s195 = sadd.s32 %s193, %s194
        %s196 = smul.addr %s195, 8
        %s197 = scalar_lea.vmem %s0, %s196
        %s198 = smul.u32 32, %s22
        %s199 = smul.u32 32, %s22
        %v200 = vld [vmem:[%s197] sm:$0xff]
        %v201 = vld [vmem:[%s197 + $0x8] sm:$0xff]
        %v202 = vld [vmem:[%s197 + $0x10] sm:$0xff]
        %v203 = vld [vmem:[%s197 + $0x18] sm:$0xff]
        %v204 = vld [vmem:[%s197 + $0x20] sm:$0xff]
        %v205 = vld [vmem:[%s197 + $0x28] sm:$0xff]
        %v206 = vld [vmem:[%s197 + $0x30] sm:$0xff]
        %v207 = vld [vmem:[%s197 + $0x38] sm:$0xff]
        %v208 = vld [vmem:[%s197 + $0x40] sm:$0xff]
        %v209 = vld [vmem:[%s197 + $0x48] sm:$0xff]
        %v210 = vld [vmem:[%s197 + $0x50] sm:$0xff]
        %v211 = vld [vmem:[%s197 + $0x58] sm:$0xff]
        %v212 = vld [vmem:[%s197 + $0x60] sm:$0xff]
        %v213 = vld [vmem:[%s197 + $0x68] sm:$0xff]
        %v214 = vld [vmem:[%s197 + $0x70] sm:$0xff]
        %v215 = vld [vmem:[%s197 + $0x78] sm:$0xff]
        %v216 = vld [vmem:[%s197 + $0x80] sm:$0xff]
        %v217 = vld [vmem:[%s197 + $0x88] sm:$0xff]
        %v218 = vld [vmem:[%s197 + $0x90] sm:$0xff]
        %v219 = vld [vmem:[%s197 + $0x98] sm:$0xff]
        %v220 = vld [vmem:[%s197 + $0xa0] sm:$0xff]
        %v221 = vld [vmem:[%s197 + $0xa8] sm:$0xff]
        %v222 = vld [vmem:[%s197 + $0xb0] sm:$0xff]
        %v223 = vld [vmem:[%s197 + $0xb8] sm:$0xff]
        %v224 = vld [vmem:[%s197 + $0xc0] sm:$0xff]
        %v225 = vld [vmem:[%s197 + $0xc8] sm:$0xff]
        %v226 = vld [vmem:[%s197 + $0xd0] sm:$0xff]
        %v227 = vld [vmem:[%s197 + $0xd8] sm:$0xff]
        %v228 = vld [vmem:[%s197 + $0xe0] sm:$0xff]
        %v229 = vld [vmem:[%s197 + $0xe8] sm:$0xff]
        %v230 = vld [vmem:[%s197 + $0xf0] sm:$0xff]
        %v231 = vld [vmem:[%s197 + $0xf8] sm:$0xff]
        %v232 = vld [vmem:[%s1] sm:$0xff]
        %v233 = vld [vmem:[%s1 + $0x8] sm:$0xff]
        %v234 = vld [vmem:[%s1 + $0x10] sm:$0xff]
        %v235 = vld [vmem:[%s1 + $0x18] sm:$0xff]
        %v236 = vld [vmem:[%s1 + $0x20] sm:$0xff]
        %v237 = vld [vmem:[%s1 + $0x28] sm:$0xff]
        %v238 = vld [vmem:[%s2] sm:$0x1]
        %v240 = vperm.slane %v238, 0
        %vm242 = vcmask 392192
        %v244 = vsel %vm242, %v200, 0
        %v247 = vsel %vm242, %v201, 0
        %v250 = vsel %vm242, %v202, 0
        %v253 = vsel %vm242, %v203, 0
        %v256 = vsel %vm242, %v204, 0
        %v259 = vsel %vm242, %v205, 0
        %v262 = vsel %vm242, %v206, 0
        %v265 = vsel %vm242, %v207, 0
        %v268 = vsel %vm242, %v208, 0
        %v271 = vsel %vm242, %v209, 0
        %v274 = vsel %vm242, %v210, 0
        %v277 = vsel %vm242, %v211, 0
        %v280 = vsel %vm242, %v212, 0
        %v283 = vsel %vm242, %v213, 0
        %v286 = vsel %vm242, %v214, 0
        %v289 = vsel %vm242, %v215, 0
        %v292 = vsel %vm242, %v216, 0
        %v295 = vsel %vm242, %v217, 0
        %v298 = vsel %vm242, %v218, 0
        %v301 = vsel %vm242, %v219, 0
        %v304 = vsel %vm242, %v220, 0
        %v307 = vsel %vm242, %v221, 0
        %v310 = vsel %vm242, %v222, 0
        %v313 = vsel %vm242, %v223, 0
        %v316 = vsel %vm242, %v224, 0
        %v319 = vsel %vm242, %v225, 0
        %v322 = vsel %vm242, %v226, 0
        %v325 = vsel %vm242, %v227, 0
        %v328 = vsel %vm242, %v228, 0
        %v331 = vsel %vm242, %v229, 0
        %v334 = vsel %vm242, %v230, 0
        %v337 = vsel %vm242, %v231, 0
        %339 = vmatpush.msra.mxu0 0.0
        %340 = vmatpush.msra.mxu0 0.0
        %341 = vmatpush.msra.mxu0 0.0
        %342 = vmatpush.msra.mxu0 0.0
        %343 = vmatpush.msra.mxu0 0.0
        %344 = vmatpush.msra.mxu0 0.0
        %345 = vmatpush.msra.mxu0 0.0
        %346 = vmatpush.msra.mxu0 0.0
        %347 = vmatpush.msra.mxu0 0.0
        %348 = vmatpush.msra.mxu0 0.0
        %349 = vmatpush.msra.mxu0 %v237
        %350 = vmatpush.msra.mxu0 %v236
        %351 = vmatpush.msra.mxu0 %v235
        %352 = vmatpush.msra.mxu0 %v234
        %353 = vmatpush.msra.mxu0 %v233
        %354 = vmatpush.msra.mxu0 %v232
        %355 = vmatmul.f32.gmra.mxu0 %v244
        %v356 = vpop.f32.mrf.mxu0
        %v357 = vadd.f32 %v240, %v356
        %358 = vmatmul.f32.gmra.mxu0 %v247
        %v359 = vpop.f32.mrf.mxu0
        %v360 = vadd.f32 %v240, %v359
        %361 = vmatmul.f32.gmra.mxu0 %v250
        %v362 = vpop.f32.mrf.mxu0
        %v363 = vadd.f32 %v240, %v362
        %364 = vmatmul.f32.gmra.mxu0 %v253
        %v365 = vpop.f32.mrf.mxu0
        %v366 = vadd.f32 %v240, %v365
        %367 = vmatmul.f32.gmra.mxu0 %v256
        %v368 = vpop.f32.mrf.mxu0
        %v369 = vadd.f32 %v240, %v368
        %370 = vmatmul.f32.gmra.mxu0 %v259
        %v371 = vpop.f32.mrf.mxu0
        %v372 = vadd.f32 %v240, %v371
        %373 = vmatmul.f32.gmra.mxu0 %v262
        %v374 = vpop.f32.mrf.mxu0
        %v375 = vadd.f32 %v240, %v374
        %376 = vmatmul.f32.gmra.mxu0 %v265
        %v377 = vpop.f32.mrf.mxu0
        %v378 = vadd.f32 %v240, %v377
        %379 = vmatmul.f32.gmra.mxu0 %v268
        %v380 = vpop.f32.mrf.mxu0
        %v381 = vadd.f32 %v240, %v380
        %382 = vmatmul.f32.gmra.mxu0 %v271
        %v383 = vpop.f32.mrf.mxu0
        %v384 = vadd.f32 %v240, %v383
        %385 = vmatmul.f32.gmra.mxu0 %v274
        %v386 = vpop.f32.mrf.mxu0
        %v387 = vadd.f32 %v240, %v386
        %388 = vmatmul.f32.gmra.mxu0 %v277
        %v389 = vpop.f32.mrf.mxu0
        %v390 = vadd.f32 %v240, %v389
        %391 = vmatmul.f32.gmra.mxu0 %v280
        %v392 = vpop.f32.mrf.mxu0
        %v393 = vadd.f32 %v240, %v392
        %394 = vmatmul.f32.gmra.mxu0 %v283
        %v395 = vpop.f32.mrf.mxu0
        %v396 = vadd.f32 %v240, %v395
        %397 = vmatmul.f32.gmra.mxu0 %v286
        %v398 = vpop.f32.mrf.mxu0
        %v399 = vadd.f32 %v240, %v398
        %400 = vmatmul.f32.gmra.mxu0 %v289
        %v401 = vpop.f32.mrf.mxu0
        %v402 = vadd.f32 %v240, %v401
        %403 = vmatmul.f32.gmra.mxu0 %v292
        %v404 = vpop.f32.mrf.mxu0
        %v405 = vadd.f32 %v240, %v404
        %406 = vmatmul.f32.gmra.mxu0 %v295
        %v407 = vpop.f32.mrf.mxu0
        %v408 = vadd.f32 %v240, %v407
        %409 = vmatmul.f32.gmra.mxu0 %v298
        %v410 = vpop.f32.mrf.mxu0
        %v411 = vadd.f32 %v240, %v410
        %412 = vmatmul.f32.gmra.mxu0 %v301
        %v413 = vpop.f32.mrf.mxu0
        %v414 = vadd.f32 %v240, %v413
        %415 = vmatmul.f32.gmra.mxu0 %v304
        %v416 = vpop.f32.mrf.mxu0
        %v417 = vadd.f32 %v240, %v416
        %418 = vmatmul.f32.gmra.mxu0 %v307
        %v419 = vpop.f32.mrf.mxu0
        %v420 = vadd.f32 %v240, %v419
        %421 = vmatmul.f32.gmra.mxu0 %v310
        %v422 = vpop.f32.mrf.mxu0
        %v423 = vadd.f32 %v240, %v422
        %424 = vmatmul.f32.gmra.mxu0 %v313
        %v425 = vpop.f32.mrf.mxu0
        %v426 = vadd.f32 %v240, %v425
        %427 = vmatmul.f32.gmra.mxu0 %v316
        %v428 = vpop.f32.mrf.mxu0
        %v429 = vadd.f32 %v240, %v428
        %430 = vmatmul.f32.gmra.mxu0 %v319
        %v431 = vpop.f32.mrf.mxu0
        %v432 = vadd.f32 %v240, %v431
        %433 = vmatmul.f32.gmra.mxu0 %v322
        %v434 = vpop.f32.mrf.mxu0
        %v435 = vadd.f32 %v240, %v434
        %436 = vmatmul.f32.gmra.mxu0 %v325
        %v437 = vpop.f32.mrf.mxu0
        %v438 = vadd.f32 %v240, %v437
        %439 = vmatmul.f32.gmra.mxu0 %v328
        %v440 = vpop.f32.mrf.mxu0
        %v441 = vadd.f32 %v240, %v440
        %442 = vmatmul.f32.gmra.mxu0 %v331
        %v443 = vpop.f32.mrf.mxu0
        %v444 = vadd.f32 %v240, %v443
        %445 = vmatmul.f32.gmra.mxu0 %v334
        %v446 = vpop.f32.mrf.mxu0
        %v447 = vadd.f32 %v240, %v446
        %448 = vmatmul.f32.gmra.mxu0 %v337
        %v449 = vpop.f32.mrf.mxu0
        %v450 = vadd.f32 %v240, %v449
        %451 = vdwg.mxu0
        %v452 = vmax.f32 %v357, 0.0
        %v453 = vmax.f32 %v360, 0.0
        %v454 = vmax.f32 %v363, 0.0
        %v455 = vmax.f32 %v366, 0.0
        %v456 = vmax.f32 %v369, 0.0
        %v457 = vmax.f32 %v372, 0.0
        %v458 = vmax.f32 %v375, 0.0
        %v459 = vmax.f32 %v378, 0.0
        %v460 = vmax.f32 %v381, 0.0
        %v461 = vmax.f32 %v384, 0.0
        %v462 = vmax.f32 %v387, 0.0
        %v463 = vmax.f32 %v390, 0.0
        %v464 = vmax.f32 %v393, 0.0
        %v465 = vmax.f32 %v396, 0.0
        %v466 = vmax.f32 %v399, 0.0
        %v467 = vmax.f32 %v402, 0.0
        %v468 = vmax.f32 %v405, 0.0
        %v469 = vmax.f32 %v408, 0.0
        %v470 = vmax.f32 %v411, 0.0
        %v471 = vmax.f32 %v414, 0.0
        %v472 = vmax.f32 %v417, 0.0
        %v473 = vmax.f32 %v420, 0.0
        %v474 = vmax.f32 %v423, 0.0
        %v475 = vmax.f32 %v426, 0.0
        %v476 = vmax.f32 %v429, 0.0
        %v477 = vmax.f32 %v432, 0.0
        %v478 = vmax.f32 %v435, 0.0
        %v479 = vmax.f32 %v438, 0.0
        %v480 = vmax.f32 %v441, 0.0
        %v481 = vmax.f32 %v444, 0.0
        %v482 = vmax.f32 %v447, 0.0
        %v483 = vmax.f32 %v450, 0.0
        %v484 = vmul.f32 %v452, 0.29730177
        %v485 = vmul.f32 %v453, 0.29730177
        %v486 = vmul.f32 %v454, 0.29730177
        %v487 = vmul.f32 %v455, 0.29730177
        %v488 = vmul.f32 %v456, 0.29730177
        %v489 = vmul.f32 %v457, 0.29730177
        %v490 = vmul.f32 %v458, 0.29730177
        %v491 = vmul.f32 %v459, 0.29730177
        %v492 = vmul.f32 %v460, 0.29730177
        %v493 = vmul.f32 %v461, 0.29730177
        %v494 = vmul.f32 %v462, 0.29730177
        %v495 = vmul.f32 %v463, 0.29730177
        %v496 = vmul.f32 %v464, 0.29730177
        %v497 = vmul.f32 %v465, 0.29730177
        %v498 = vmul.f32 %v466, 0.29730177
        %v499 = vmul.f32 %v467, 0.29730177
        %v500 = vmul.f32 %v468, 0.29730177
        %v501 = vmul.f32 %v469, 0.29730177
        %v502 = vmul.f32 %v470, 0.29730177
        %v503 = vmul.f32 %v471, 0.29730177
        %v504 = vmul.f32 %v472, 0.29730177
        %v505 = vmul.f32 %v473, 0.29730177
        %v506 = vmul.f32 %v474, 0.29730177
        %v507 = vmul.f32 %v475, 0.29730177
        %v508 = vmul.f32 %v476, 0.29730177
        %v509 = vmul.f32 %v477, 0.29730177
        %v510 = vmul.f32 %v478, 0.29730177
        %v511 = vmul.f32 %v479, 0.29730177
        %v512 = vmul.f32 %v480, 0.29730177
        %v513 = vmul.f32 %v481, 0.29730177
        %v514 = vmul.f32 %v482, 0.29730177
        %v515 = vmul.f32 %v483, 0.29730177
        %v516 = vpack.c.bf16 %v484, %v484
        %v517 = vpack.c.bf16 %v485, %v485
        %v518 = vpack.c.bf16 %v486, %v486
        %v519 = vpack.c.bf16 %v487, %v487
        %v520 = vpack.c.bf16 %v488, %v488
        %v521 = vpack.c.bf16 %v489, %v489
        %v522 = vpack.c.bf16 %v490, %v490
        %v523 = vpack.c.bf16 %v491, %v491
        %v524 = vpack.c.bf16 %v492, %v492
        %v525 = vpack.c.bf16 %v493, %v493
        %v526 = vpack.c.bf16 %v494, %v494
        %v527 = vpack.c.bf16 %v495, %v495
        %v528 = vpack.c.bf16 %v496, %v496
        %v529 = vpack.c.bf16 %v497, %v497
        %v530 = vpack.c.bf16 %v498, %v498
        %v531 = vpack.c.bf16 %v499, %v499
        %v532 = vpack.c.bf16 %v500, %v500
        %v533 = vpack.c.bf16 %v501, %v501
        %v534 = vpack.c.bf16 %v502, %v502
        %v535 = vpack.c.bf16 %v503, %v503
        %v536 = vpack.c.bf16 %v504, %v504
        %v537 = vpack.c.bf16 %v505, %v505
        %v538 = vpack.c.bf16 %v506, %v506
        %v539 = vpack.c.bf16 %v507, %v507
        %v540 = vpack.c.bf16 %v508, %v508
        %v541 = vpack.c.bf16 %v509, %v509
        %v542 = vpack.c.bf16 %v510, %v510
        %v543 = vpack.c.bf16 %v511, %v511
        %v544 = vpack.c.bf16 %v512, %v512
        %v545 = vpack.c.bf16 %v513, %v513
        %v546 = vpack.c.bf16 %v514, %v514
        %v547 = vpack.c.bf16 %v515, %v515
        %548 = vst [vmem:[%s188] sm:$0xf] %v516
        %549 = vst [vmem:[%s188 + $0x4] sm:$0xf] %v517
        %550 = vst [vmem:[%s188 + $0x8] sm:$0xf] %v518
        %551 = vst [vmem:[%s188 + $0xc] sm:$0xf] %v519
        %552 = vst [vmem:[%s188 + $0x10] sm:$0xf] %v520
        %553 = vst [vmem:[%s188 + $0x14] sm:$0xf] %v521
        %554 = vst [vmem:[%s188 + $0x18] sm:$0xf] %v522
        %555 = vst [vmem:[%s188 + $0x1c] sm:$0xf] %v523
        %556 = vst [vmem:[%s188 + $0x20] sm:$0xf] %v524
        %557 = vst [vmem:[%s188 + $0x24] sm:$0xf] %v525
        %558 = vst [vmem:[%s188 + $0x28] sm:$0xf] %v526
        %559 = vst [vmem:[%s188 + $0x2c] sm:$0xf] %v527
        %560 = vst [vmem:[%s188 + $0x30] sm:$0xf] %v528
        %561 = vst [vmem:[%s188 + $0x34] sm:$0xf] %v529
        %562 = vst [vmem:[%s188 + $0x38] sm:$0xf] %v530
        %563 = vst [vmem:[%s188 + $0x3c] sm:$0xf] %v531
        %564 = vst [vmem:[%s188 + $0x40] sm:$0xf] %v532
        %565 = vst [vmem:[%s188 + $0x44] sm:$0xf] %v533
        %566 = vst [vmem:[%s188 + $0x48] sm:$0xf] %v534
        %567 = vst [vmem:[%s188 + $0x4c] sm:$0xf] %v535
        %568 = vst [vmem:[%s188 + $0x50] sm:$0xf] %v536
        %569 = vst [vmem:[%s188 + $0x54] sm:$0xf] %v537
        %570 = vst [vmem:[%s188 + $0x58] sm:$0xf] %v538
        %571 = vst [vmem:[%s188 + $0x5c] sm:$0xf] %v539
        %572 = vst [vmem:[%s188 + $0x60] sm:$0xf] %v540
        %573 = vst [vmem:[%s188 + $0x64] sm:$0xf] %v541
        %574 = vst [vmem:[%s188 + $0x68] sm:$0xf] %v542
        %575 = vst [vmem:[%s188 + $0x6c] sm:$0xf] %v543
        %576 = vst [vmem:[%s188 + $0x70] sm:$0xf] %v544
        %577 = vst [vmem:[%s188 + $0x74] sm:$0xf] %v545
        %578 = vst [vmem:[%s188 + $0x78] sm:$0xf] %v546
        %579 = vst [vmem:[%s188 + $0x7c] sm:$0xf] %v547
        %s580 = sand.u32 %s109, 1
        %s581 = scalar_lea.sflag [#allocation3], %s580
        %s582 = sand.u32 %s109, 1
        %s583 = smul.addr %s582, 128
        %s584 = scalar_lea.vmem [#allocation2], %s583
        // Predicated region
        $region33: #{tpu_custom_call.1} parent=31 // pred_check
          %p585 = pneg %p119
        $region34: #{tpu_custom_call.1} parent=31 // pred_check_branch
          %587 = sbr.rel (%p585) target = $region36
        $region35: #{tpu_custom_call.1} parent=31 // pred_region
          %s588 = smul.u32 32, %s22
          %590 = vsyncadd %s581, 0
          %s591 = smul.addr %s21, 32
          %s592 = sadd.s32 %s588, %s591
          %s593 = smul.addr %s592, 4
          %s594 = scalar_lea.hbm %s3, %s593
          %s595 = sshll.u32 %s584, 4
          %s596 = int_to_ptr.vmem [resolvable:$true] %s595
          %s597 = sshll.u32 %s594, 4
          %s598 = int_to_ptr.hbm [resolvable:$true] %s597
          %603 = dma.vmem_to_hbm [thread:$0]  %s596, 2048, %s598, %s581, 64, 64, 4
        $region36: #{tpu_custom_call.1} parent=31 // pred_fallthru
          _
      $region32: #{tpu_custom_call.1} parent=5 // pred_fallthru
        _
      %p604 = scmp.le.s32.totalorder 2, %s12
      // Predicated region
      $region37: #{tpu_custom_call.1} parent=5 // pred_check
        %p605 = pneg %p604
      $region38: #{tpu_custom_call.1} parent=5 // pred_check_branch
        %607 = sbr.rel (%p605) target = $region40
      $region39: #{tpu_custom_call.1} parent=5 // pred_region
        %s608 = ssub.s32 %s12, 2
        // Predicated region
        $region41: #{tpu_custom_call.1} parent=39 // pred_check
          %p609 = pneg %p125
        $region42: #{tpu_custom_call.1} parent=39 // pred_check_branch
          %611 = sbr.rel (%p609) target = $region44
        $region43: #{tpu_custom_call.1} parent=39 // pred_region
          %s612 = sand.u32 %s110, 1
          %s613 = scalar_lea.sflag [#allocation3], %s612
          %s614 = sand.u32 %s110, 1
          %s615 = smul.addr %s614, 128
          %s616 = scalar_lea.vmem [#allocation2], %s615
          %618 = dma.done %s613, 2048
        $region44: #{tpu_custom_call.1} parent=39 // pred_fallthru
          _
      $region40: #{tpu_custom_call.1} parent=5 // pred_fallthru
        _
    $region6: #{tpu_custom_call.1} parent=1 // loop_footer
      %s16 = sadd.s32 1, %s12
    $region7: #{tpu_custom_call.1} parent=1 // loop_footer_branch
      %11 = sbr.rel target = $region3
    $region8: #{tpu_custom_call.1} parent=1 // loop_exit
      _
    %619 = vsyncpa [#allocation3], 1
    %s620 = scalar_lea.sflag [#allocation3], 1
    %621 = vsyncpa %s620, 1

</llo_original>
